<compile_context>
chip_gen: v6e
topology: v6e:2x2x1
jax: 0.10.0
libtpu: 0.0.40
codegen_flags: <defaults>
</compile_context>

<pallas_src>
import functools

import jax
import jax.numpy as jnp
from jax.experimental import pallas as pl
from jax.experimental.pallas import tpu as pltpu


# ----------------------------------------------------------------------------
# In-kernel helpers
# ----------------------------------------------------------------------------

def _tree_sum(terms):
    """Pairwise (tree) reduction -> shorter VALU dependence chain than a
    serial `acc += t` chain (perf-review item)."""
    while len(terms) > 1:
        nxt = [terms[i] + terms[i + 1] for i in range(0, len(terms) - 1, 2)]
        if len(terms) % 2:
            nxt.append(terms[-1])
        terms = nxt
    return terms[0]


def _conv1d_taps(xv, w_t, *, start, length, k_taps, cin):
    """Stride-1 1-D conv as K*cin lane-shifted VPU broadcast-MACs.

    xv : (cin, W) value already in vregs -- length on the LANE axis.
    w_t: (cout, k_taps*cin) value; column k*cin + c holds w[k, c, :].
    Returns sum_{k,c} w_t[:, k*cin+c] (x) xv[c, start+k : start+k+length],
    shape (cout, length).

    The shifted windows are static minor-dim slices of an in-register value
    (lane shifts/selects), not VMEM loads of a padded scratch buffer, so no
    partial-store/reload round trip is needed.  cin/cout are tiny (4/8/16),
    far below MXU granularity, so the contraction stays on the VPU as exact
    f32 broadcast MACs.
    """
    terms = []
    for k in range(k_taps):
        xs = xv[:, start + k:start + k + length]            # (cin, length)
        for c in range(cin):
            col = w_t[:, k * cin + c:k * cin + c + 1]       # (cout, 1)
            terms.append(col * xs[c:c + 1, :])              # (cout, length)
    return _tree_sum(terms)


# ----------------------------------------------------------------------------
# Pallas kernels (one grid step == one batch element)
# ----------------------------------------------------------------------------

def _residual_block_fused_kernel(xp_ref, w13_ref, b13_ref, w2_ref, b2_ref,
                                 out_ref, *, K, Cin, Cout, padding, stride,
                                 a, c1, Wh, L1, L2s, L_out):
    """Fused path (skip conv padding == 1 == conv1 padding): conv1 and the
    skip conv share tap windows, so they run as ONE contraction with weights
    stacked along the output-channel (sublane) axis."""
    xp = xp_ref[...]                    # (Cin, W) padded input, lanes = length
    w13 = w13_ref[...]                  # (2*Cout, K*Cin)   -- loaded ONCE
    b13 = b13_ref[...]                  # (2*Cout, 1)
    w2 = w2_ref[...]                    # (Cout, K*Cout)
    b2 = b2_ref[...]                    # (Cout, 1)

    fused = _conv1d_taps(xp, w13, start=a - c1 - 1, length=Wh,
                         k_taps=K, cin=Cin) + b13           # (2*Cout, Wh)
    skip = fused[Cout:, c1:c1 + L2s]                        # skip-conv output
    h1 = jax.nn.relu(fused[:Cout, :])                       # conv1 -> ReLU
    # TODO(synk): nn.Dropout after conv1 -> identity (inference mode).

    # h1 occupies columns [c1, c1+L1) of the working width Wh; zeroing the
    # rest IS conv2's zero padding (no padded scratch buffer needed).
    lane = jax.lax.broadcasted_iota(jnp.int32, (Cout, Wh), 1)
    h1 = jnp.where((lane >= c1) & (lane < c1 + L1), h1, 0.0)

    y = _conv1d_taps(h1, w2, start=c1 - padding, length=L2s,
                     k_taps=K, cin=Cout) + b2               # block conv2
    out = jax.nn.relu(y + skip)                             # residual + ReLU
    # TODO(synk): final nn.Dropout -> identity (inference mode).
    if stride > 1:
        # TODO(synk): strided convs are computed at stride 1 and
        # lane-subsampled here; unexercised by the demo configs below.
        out = out[:, :(L_out - 1) * stride + 1:stride]
    out_ref[...] = out


def _residual_block_general_kernel(xp_ref, w1_ref, b1_ref, w2_ref, b2_ref,
                                   w3_ref, b3_ref, out_ref, *, K, Cin, Cout,
                                   padding, stride, a, c1, Wh, L1, L2s, L_out):
    """General path: skip conv has its own padding; all three convolutions
    still run inside this single kernel invocation."""
    xp = xp_ref[...]                    # (Cin, W)
    w1 = w1_ref[...]; b1 = b1_ref[...]  # loaded ONCE (hoisted out of any loop)
    w2 = w2_ref[...]; b2 = b2_ref[...]
    w3 = w3_ref[...]; b3 = b3_ref[...]

    h1 = jax.nn.relu(_conv1d_taps(xp, w1, start=a - c1 - 1, length=Wh,
                                  k_taps=K, cin=Cin) + b1)  # conv1 -> ReLU
    # TODO(synk): nn.Dropout after conv1 -> identity (inference mode).
    lane = jax.lax.broadcasted_iota(jnp.int32, (Cout, Wh), 1)
    h1 = jnp.where((lane >= c1) & (lane < c1 + L1), h1, 0.0)

    y = _conv1d_taps(h1, w2, start=c1 - padding, length=L2s,
                     k_taps=K, cin=Cout) + b2               # block conv2
    skip = _conv1d_taps(xp, w3, start=a - padding, length=L2s,
                        k_taps=K, cin=Cin) + b3             # skip conv
    out = jax.nn.relu(y + skip)
    # TODO(synk): final nn.Dropout -> identity (inference mode).
    if stride > 1:
        # TODO(synk): stride-1 compute + lane subsample; unexercised below.
        out = out[:, :(L_out - 1) * stride + 1:stride]
    out_ref[...] = out


# ----------------------------------------------------------------------------
# Wrapper
# ----------------------------------------------------------------------------

def residual_block_forward(x, params, *, kernel_size, stride, padding):
    """x: (B, Cin, L) channels-first (PyTorch Conv1d layout).
    Returns (B, Cout, L_out) in float32."""
    B, Cin, Lin = x.shape
    K = kernel_size
    w1, b1 = params['conv1']     # (K, Cin, Cout), (Cout,)
    w2, b2 = params['conv2']     # (K, Cout, Cout), (Cout,)
    w3, b3 = params['skip']      # (K, Cin, Cout), (Cout,)
    Cout = w1.shape[-1]

    # Geometry (everything is computed at stride 1 in "padded coordinates").
    a = max(1, padding) + 1                # wrapper-side halo on x
    W = Lin + 2 * a                        # padded input width
    c1 = padding                           # column offset of h1 inside H1m
    L1 = Lin + 2 - K + 1                   # conv1 output length (stride1,pad1)
    L2s = L1 + 2 * padding - K + 1         # stride-1 length of block conv2 out
    Ls1 = Lin + 2 * padding - K + 1        # stride-1 length of skip conv out
    assert Ls1 == L2s, ("residual branches must have matching lengths "
                        "(conv1 must be length-preserving, i.e. K == 3)")
    L_out = (L1 + 2 * padding - K) // stride + 1
    Wh = L2s + K - 1                       # working width of padded conv1 out

    # Static slice-bound checks.
    assert a - c1 - 1 >= 0 and (a - c1 - 1) + (K - 1) + Wh <= W
    assert c1 - padding >= 0 and (c1 - padding) + (K - 1) + L2s <= Wh
    assert a - padding >= 0 and (a - padding) + (K - 1) + L2s <= W
    assert (L_out - 1) * stride + 1 <= L2s

    # One wrapper-side zero pad of x (layout plumbing) replaces the previous
    # in-kernel padded VMEM scratch + masked partial stores + reloads.
    xpad = jnp.pad(x.astype(jnp.float32), ((0, 0), (0, 0), (a, a)))

    def _prep_w(w):                        # (K, Ci, Co) -> (Co, K*Ci)
        kk, ci, co = w.shape
        return jnp.transpose(w, (2, 0, 1)).reshape(co, kk * ci)

    w2_t = _prep_w(w2)
    b2v = b2.reshape(Cout, 1)

    common = dict(K=K, Cin=Cin, Cout=Cout, padding=padding, stride=stride,
                  a=a, c1=c1, Wh=Wh, L1=L1, L2s=L2s, L_out=L_out)

    if padding == 1:
        # conv1 and skip share tap windows -> ONE fused contraction with
        # weights stacked along output channels (2*Cout rows per MAC).
        w13_t = jnp.concatenate([_prep_w(w1), _prep_w(w3)], axis=0)
        b13 = jnp.concatenate([b1, b3], axis=0).reshape(2 * Cout, 1)
        assert c1 + L2s <= Wh
        kernel = functools.partial(_residual_block_fused_kernel, **common)
        weights = (w13_t, b13, w2_t, b2v)
    else:
        kernel = functools.partial(_residual_block_general_kernel, **common)
        weights = (_prep_w(w1), b1.reshape(Cout, 1), w2_t, b2v,
                   _prep_w(w3), b3.reshape(Cout, 1))

    # Weights map to the same block every grid step -> fetched once, resident.
    w_specs = [pl.BlockSpec(w.shape, lambda b: (0, 0)) for w in weights]

    return pl.pallas_call(
        kernel,
        out_shape=jax.ShapeDtypeStruct((B, Cout, L_out), jnp.float32),
        grid=(B,),
        in_specs=[pl.BlockSpec((None, Cin, W), lambda b: (b, 0, 0))] + w_specs,
        out_specs=pl.BlockSpec((None, Cout, L_out), lambda b: (b, 0, 0)),
        compiler_params=pltpu.CompilerParams(
            dimension_semantics=("parallel",)),   # 2nd TensorCore on v7x
    )(xpad, *weights)


# ----------------------------------------------------------------------------
# Pure-JAX reference (independent algorithm: XLA conv at HIGHEST precision)
# ----------------------------------------------------------------------------

def _ref_conv1d(x, w, b, *, stride, padding):
    # x: (B, Cin, L); w: (K, Cin, Cout); b: (Cout,)
    y = jax.lax.conv_general_dilated(
        x, w, window_strides=(stride,), padding=[(padding, padding)],
        dimension_numbers=('NCW', 'WIO', 'NCW'),
        precision=jax.lax.Precision.HIGHEST)
    return y + b[None, :, None]


def _ref_residual_block(x, params, *, stride, padding):
    w1, b1 = params['conv1']
    w2, b2 = params['conv2']
    w3, b3 = params['skip']
    h = jax.nn.relu(_ref_conv1d(x, w1, b1, stride=1, padding=1))
    h = _ref_conv1d(h, w2, b2, stride=stride, padding=padding)
    s = _ref_conv1d(x, w3, b3, stride=stride, padding=padding)
    return jax.nn.relu(h + s)


# ----------------------------------------------------------------------------
# Deterministic parameter init
# ----------------------------------------------------------------------------

def make_params(key, in_channels, out_channels, kernel_size):
    ks = jax.random.split(key, 6)

    def conv_w(kk, cin, cout):
        # kaiming_normal_ (fan_in, ReLU): std = sqrt(2 / (cin * kernel_size))
        std = (2.0 / (cin * kernel_size)) ** 0.5
        return std * jax.random.normal(kk, (kernel_size, cin, cout), jnp.float32)

    def conv_b(kk, cout):
        # PyTorch init zeroes biases; small random values here so the
        # numerical check actually exercises the bias-add path.
        return 0.1 * jax.random.normal(kk, (cout,), jnp.float32)

    return {
        'conv1': (conv_w(ks[0], in_channels, out_channels), conv_b(ks[1], out_channels)),
        'conv2': (conv_w(ks[2], out_channels, out_channels), conv_b(ks[3], out_channels)),
        'skip': (conv_w(ks[4], in_channels, out_channels), conv_b(ks[5], out_channels)),
    }


# ----------------------------------------------------------------------------
# Main
# ----------------------------------------------------------------------------

if __name__ == "__main__":
    B, CIN, COUT, L, K = 2, 4, 8, 16, 3

    key = jax.random.PRNGKey(0)
    kp, kx = jax.random.split(key)
    params = make_params(kp, CIN, COUT, K)
    x = jax.random.normal(kx, (B, CIN, L), jnp.float32)   # (B, C, L) like PyTorch

    # Config 1 (fused conv1+skip contraction): stride=1, padding=1 -> (B, COUT, 16)
    out1 = residual_block_forward(x, params, kernel_size=K, stride=1, padding=1)
    jax.block_until_ready(out1)
    ref1 = _ref_residual_block(x, params, stride=1, padding=1)
    assert out1.shape == ref1.shape == (B, COUT, L)
    err1 = float(jnp.max(jnp.abs(out1 - ref1)))
    assert err1 < 1e-5, err1

    # Config 2 (general path, separate skip contraction): stride=1, padding=2
    out2 = residual_block_forward(x, params, kernel_size=K, stride=1, padding=2)
    jax.block_until_ready(out2)
    ref2 = _ref_residual_block(x, params, stride=1, padding=2)
    assert out2.shape == ref2.shape == (B, COUT, L + 2)
    err2 = float(jnp.max(jnp.abs(out2 - ref2)))
    assert err2 < 1e-5, err2

    print("KERNEL_OK")
</pallas_src>

<mosaic_0001>
module attributes {stable_mosaic.version = 11 : i64} {
  func.func @_residual_block_fused_kernel(%arg0: i32, %arg1: memref<1x4x20xf32, #tpu.memory_space<vmem>>, %arg2: memref<16x12xf32, #tpu.memory_space<vmem>>, %arg3: memref<16x1xf32, #tpu.memory_space<vmem>>, %arg4: memref<8x24xf32, #tpu.memory_space<vmem>>, %arg5: memref<8x1xf32, #tpu.memory_space<vmem>>, %arg6: memref<1x8x16xf32, #tpu.memory_space<vmem>>) attributes {dimension_semantics = [#tpu.dimension_semantics<parallel>], iteration_bounds = array<i64: 2>, scalar_prefetch = 0 : i64, scratch_operands = 0 : i64, tpu.core_type = #tpu.core_type<tc>, window_params = [{transform_indices = @transform_0, window_bounds = array<i64: 1, 4, 20>}, {pipeline_mode = #tpu.pipeline_mode<synchronous>, transform_indices = @transform_1, window_bounds = array<i64: 16, 12>}, {pipeline_mode = #tpu.pipeline_mode<synchronous>, transform_indices = @transform_2, window_bounds = array<i64: 16, 1>}, {pipeline_mode = #tpu.pipeline_mode<synchronous>, transform_indices = @transform_3, window_bounds = array<i64: 8, 24>}, {pipeline_mode = #tpu.pipeline_mode<synchronous>, transform_indices = @transform_4, window_bounds = array<i64: 8, 1>}, {transform_indices = @transform_5, window_bounds = array<i64: 1, 8, 16>}]} {
    %c0 = arith.constant 0 : index
    %c0_0 = arith.constant 0 : index
    %c0_1 = arith.constant 0 : index
    %0 = vector.load %arg1[%c0, %c0_0, %c0_1] : memref<1x4x20xf32, #tpu.memory_space<vmem>>, vector<1x4x20xf32>
    %1 = vector.shape_cast %0 : vector<1x4x20xf32> to vector<4x20xf32>
    %c0_2 = arith.constant 0 : index
    %c0_3 = arith.constant 0 : index
    %2 = vector.load %arg2[%c0_2, %c0_3] : memref<16x12xf32, #tpu.memory_space<vmem>>, vector<16x12xf32>
    %c0_4 = arith.constant 0 : index
    %c0_5 = arith.constant 0 : index
    %3 = vector.load %arg3[%c0_4, %c0_5] : memref<16x1xf32, #tpu.memory_space<vmem>>, vector<16x1xf32>
    %c0_6 = arith.constant 0 : index
    %c0_7 = arith.constant 0 : index
    %4 = vector.load %arg4[%c0_6, %c0_7] : memref<8x24xf32, #tpu.memory_space<vmem>>, vector<8x24xf32>
    %c0_8 = arith.constant 0 : index
    %c0_9 = arith.constant 0 : index
    %5 = vector.load %arg5[%c0_8, %c0_9] : memref<8x1xf32, #tpu.memory_space<vmem>>, vector<8x1xf32>
    %6 = vector.extract_strided_slice %1 {offsets = [0, 0], sizes = [4, 18], strides = [1, 1]} : vector<4x20xf32> to vector<4x18xf32>
    %7 = vector.extract_strided_slice %2 {offsets = [0, 0], sizes = [16, 1], strides = [1, 1]} : vector<16x12xf32> to vector<16x1xf32>
    %8 = vector.extract_strided_slice %6 {offsets = [0, 0], sizes = [1, 18], strides = [1, 1]} : vector<4x18xf32> to vector<1x18xf32>
    %9 = vector.broadcast %7 : vector<16x1xf32> to vector<16x18xf32>
    %10 = vector.broadcast %8 : vector<1x18xf32> to vector<16x18xf32>
    %11 = arith.mulf %9, %10 : vector<16x18xf32>
    %12 = vector.extract_strided_slice %2 {offsets = [0, 1], sizes = [16, 1], strides = [1, 1]} : vector<16x12xf32> to vector<16x1xf32>
    %13 = vector.extract_strided_slice %6 {offsets = [1, 0], sizes = [1, 18], strides = [1, 1]} : vector<4x18xf32> to vector<1x18xf32>
    %14 = vector.broadcast %12 : vector<16x1xf32> to vector<16x18xf32>
    %15 = vector.broadcast %13 : vector<1x18xf32> to vector<16x18xf32>
    %16 = arith.mulf %14, %15 : vector<16x18xf32>
    %17 = vector.extract_strided_slice %2 {offsets = [0, 2], sizes = [16, 1], strides = [1, 1]} : vector<16x12xf32> to vector<16x1xf32>
    %18 = vector.extract_strided_slice %6 {offsets = [2, 0], sizes = [1, 18], strides = [1, 1]} : vector<4x18xf32> to vector<1x18xf32>
    %19 = vector.broadcast %17 : vector<16x1xf32> to vector<16x18xf32>
    %20 = vector.broadcast %18 : vector<1x18xf32> to vector<16x18xf32>
    %21 = arith.mulf %19, %20 : vector<16x18xf32>
    %22 = vector.extract_strided_slice %2 {offsets = [0, 3], sizes = [16, 1], strides = [1, 1]} : vector<16x12xf32> to vector<16x1xf32>
    %23 = vector.extract_strided_slice %6 {offsets = [3, 0], sizes = [1, 18], strides = [1, 1]} : vector<4x18xf32> to vector<1x18xf32>
    %24 = vector.broadcast %22 : vector<16x1xf32> to vector<16x18xf32>
    %25 = vector.broadcast %23 : vector<1x18xf32> to vector<16x18xf32>
    %26 = arith.mulf %24, %25 : vector<16x18xf32>
    %27 = vector.extract_strided_slice %1 {offsets = [0, 1], sizes = [4, 18], strides = [1, 1]} : vector<4x20xf32> to vector<4x18xf32>
    %28 = vector.extract_strided_slice %2 {offsets = [0, 4], sizes = [16, 1], strides = [1, 1]} : vector<16x12xf32> to vector<16x1xf32>
    %29 = vector.extract_strided_slice %27 {offsets = [0, 0], sizes = [1, 18], strides = [1, 1]} : vector<4x18xf32> to vector<1x18xf32>
    %30 = vector.broadcast %28 : vector<16x1xf32> to vector<16x18xf32>
    %31 = vector.broadcast %29 : vector<1x18xf32> to vector<16x18xf32>
    %32 = arith.mulf %30, %31 : vector<16x18xf32>
    %33 = vector.extract_strided_slice %2 {offsets = [0, 5], sizes = [16, 1], strides = [1, 1]} : vector<16x12xf32> to vector<16x1xf32>
    %34 = vector.extract_strided_slice %27 {offsets = [1, 0], sizes = [1, 18], strides = [1, 1]} : vector<4x18xf32> to vector<1x18xf32>
    %35 = vector.broadcast %33 : vector<16x1xf32> to vector<16x18xf32>
    %36 = vector.broadcast %34 : vector<1x18xf32> to vector<16x18xf32>
    %37 = arith.mulf %35, %36 : vector<16x18xf32>
    %38 = vector.extract_strided_slice %2 {offsets = [0, 6], sizes = [16, 1], strides = [1, 1]} : vector<16x12xf32> to vector<16x1xf32>
    %39 = vector.extract_strided_slice %27 {offsets = [2, 0], sizes = [1, 18], strides = [1, 1]} : vector<4x18xf32> to vector<1x18xf32>
    %40 = vector.broadcast %38 : vector<16x1xf32> to vector<16x18xf32>
    %41 = vector.broadcast %39 : vector<1x18xf32> to vector<16x18xf32>
    %42 = arith.mulf %40, %41 : vector<16x18xf32>
    %43 = vector.extract_strided_slice %2 {offsets = [0, 7], sizes = [16, 1], strides = [1, 1]} : vector<16x12xf32> to vector<16x1xf32>
    %44 = vector.extract_strided_slice %27 {offsets = [3, 0], sizes = [1, 18], strides = [1, 1]} : vector<4x18xf32> to vector<1x18xf32>
    %45 = vector.broadcast %43 : vector<16x1xf32> to vector<16x18xf32>
    %46 = vector.broadcast %44 : vector<1x18xf32> to vector<16x18xf32>
    %47 = arith.mulf %45, %46 : vector<16x18xf32>
    %48 = vector.extract_strided_slice %1 {offsets = [0, 2], sizes = [4, 18], strides = [1, 1]} : vector<4x20xf32> to vector<4x18xf32>
    %49 = vector.extract_strided_slice %2 {offsets = [0, 8], sizes = [16, 1], strides = [1, 1]} : vector<16x12xf32> to vector<16x1xf32>
    %50 = vector.extract_strided_slice %48 {offsets = [0, 0], sizes = [1, 18], strides = [1, 1]} : vector<4x18xf32> to vector<1x18xf32>
    %51 = vector.broadcast %49 : vector<16x1xf32> to vector<16x18xf32>
    %52 = vector.broadcast %50 : vector<1x18xf32> to vector<16x18xf32>
    %53 = arith.mulf %51, %52 : vector<16x18xf32>
    %54 = vector.extract_strided_slice %2 {offsets = [0, 9], sizes = [16, 1], strides = [1, 1]} : vector<16x12xf32> to vector<16x1xf32>
    %55 = vector.extract_strided_slice %48 {offsets = [1, 0], sizes = [1, 18], strides = [1, 1]} : vector<4x18xf32> to vector<1x18xf32>
    %56 = vector.broadcast %54 : vector<16x1xf32> to vector<16x18xf32>
    %57 = vector.broadcast %55 : vector<1x18xf32> to vector<16x18xf32>
    %58 = arith.mulf %56, %57 : vector<16x18xf32>
    %59 = vector.extract_strided_slice %2 {offsets = [0, 10], sizes = [16, 1], strides = [1, 1]} : vector<16x12xf32> to vector<16x1xf32>
    %60 = vector.extract_strided_slice %48 {offsets = [2, 0], sizes = [1, 18], strides = [1, 1]} : vector<4x18xf32> to vector<1x18xf32>
    %61 = vector.broadcast %59 : vector<16x1xf32> to vector<16x18xf32>
    %62 = vector.broadcast %60 : vector<1x18xf32> to vector<16x18xf32>
    %63 = arith.mulf %61, %62 : vector<16x18xf32>
    %64 = vector.extract_strided_slice %2 {offsets = [0, 11], sizes = [16, 1], strides = [1, 1]} : vector<16x12xf32> to vector<16x1xf32>
    %65 = vector.extract_strided_slice %48 {offsets = [3, 0], sizes = [1, 18], strides = [1, 1]} : vector<4x18xf32> to vector<1x18xf32>
    %66 = vector.broadcast %64 : vector<16x1xf32> to vector<16x18xf32>
    %67 = vector.broadcast %65 : vector<1x18xf32> to vector<16x18xf32>
    %68 = arith.mulf %66, %67 : vector<16x18xf32>
    %69 = arith.addf %11, %16 : vector<16x18xf32>
    %70 = arith.addf %21, %26 : vector<16x18xf32>
    %71 = arith.addf %32, %37 : vector<16x18xf32>
    %72 = arith.addf %42, %47 : vector<16x18xf32>
    %73 = arith.addf %53, %58 : vector<16x18xf32>
    %74 = arith.addf %63, %68 : vector<16x18xf32>
    %75 = arith.addf %69, %70 : vector<16x18xf32>
    %76 = arith.addf %71, %72 : vector<16x18xf32>
    %77 = arith.addf %73, %74 : vector<16x18xf32>
    %78 = arith.addf %75, %76 : vector<16x18xf32>
    %79 = arith.addf %78, %77 : vector<16x18xf32>
    %80 = vector.broadcast %3 : vector<16x1xf32> to vector<16x18xf32>
    %81 = arith.addf %79, %80 : vector<16x18xf32>
    %82 = vector.extract_strided_slice %81 {offsets = [8, 1], sizes = [8, 16], strides = [1, 1]} : vector<16x18xf32> to vector<8x16xf32>
    %83 = vector.extract_strided_slice %81 {offsets = [0, 0], sizes = [8, 18], strides = [1, 1]} : vector<16x18xf32> to vector<8x18xf32>
    %cst = arith.constant 0.000000e+00 : f32
    %84 = vector.broadcast %cst : f32 to vector<8x18xf32>
    %85 = arith.maximumf %83, %84 : vector<8x18xf32>
    %86 = tpu.iota {dimensions = array<i32: 1>} : vector<8x18xi32>
    %c1_i32 = arith.constant 1 : i32
    %87 = vector.broadcast %c1_i32 : i32 to vector<8x18xi32>
    %88 = arith.cmpi sge, %86, %87 : vector<8x18xi32>
    %c17_i32 = arith.constant 17 : i32
    %89 = vector.broadcast %c17_i32 : i32 to vector<8x18xi32>
    %90 = arith.cmpi slt, %86, %89 : vector<8x18xi32>
    %91 = arith.andi %88, %90 : vector<8x18xi1>
    %cst_10 = arith.constant 0.000000e+00 : f32
    %92 = vector.broadcast %cst_10 : f32 to vector<8x18xf32>
    %93 = arith.select %91, %85, %92 : vector<8x18xi1>, vector<8x18xf32>
    %94 = vector.extract_strided_slice %93 {offsets = [0, 0], sizes = [8, 16], strides = [1, 1]} : vector<8x18xf32> to vector<8x16xf32>
    %95 = vector.extract_strided_slice %4 {offsets = [0, 0], sizes = [8, 1], strides = [1, 1]} : vector<8x24xf32> to vector<8x1xf32>
    %96 = vector.extract_strided_slice %94 {offsets = [0, 0], sizes = [1, 16], strides = [1, 1]} : vector<8x16xf32> to vector<1x16xf32>
    %97 = vector.broadcast %95 : vector<8x1xf32> to vector<8x16xf32>
    %98 = vector.broadcast %96 : vector<1x16xf32> to vector<8x16xf32>
    %99 = arith.mulf %97, %98 : vector<8x16xf32>
    %100 = vector.extract_strided_slice %4 {offsets = [0, 1], sizes = [8, 1], strides = [1, 1]} : vector<8x24xf32> to vector<8x1xf32>
    %101 = vector.extract_strided_slice %94 {offsets = [1, 0], sizes = [1, 16], strides = [1, 1]} : vector<8x16xf32> to vector<1x16xf32>
    %102 = vector.broadcast %100 : vector<8x1xf32> to vector<8x16xf32>
    %103 = vector.broadcast %101 : vector<1x16xf32> to vector<8x16xf32>
    %104 = arith.mulf %102, %103 : vector<8x16xf32>
    %105 = vector.extract_strided_slice %4 {offsets = [0, 2], sizes = [8, 1], strides = [1, 1]} : vector<8x24xf32> to vector<8x1xf32>
    %106 = vector.extract_strided_slice %94 {offsets = [2, 0], sizes = [1, 16], strides = [1, 1]} : vector<8x16xf32> to vector<1x16xf32>
    %107 = vector.broadcast %105 : vector<8x1xf32> to vector<8x16xf32>
    %108 = vector.broadcast %106 : vector<1x16xf32> to vector<8x16xf32>
    %109 = arith.mulf %107, %108 : vector<8x16xf32>
    %110 = vector.extract_strided_slice %4 {offsets = [0, 3], sizes = [8, 1], strides = [1, 1]} : vector<8x24xf32> to vector<8x1xf32>
    %111 = vector.extract_strided_slice %94 {offsets = [3, 0], sizes = [1, 16], strides = [1, 1]} : vector<8x16xf32> to vector<1x16xf32>
    %112 = vector.broadcast %110 : vector<8x1xf32> to vector<8x16xf32>
    %113 = vector.broadcast %111 : vector<1x16xf32> to vector<8x16xf32>
    %114 = arith.mulf %112, %113 : vector<8x16xf32>
    %115 = vector.extract_strided_slice %4 {offsets = [0, 4], sizes = [8, 1], strides = [1, 1]} : vector<8x24xf32> to vector<8x1xf32>
    %116 = vector.extract_strided_slice %94 {offsets = [4, 0], sizes = [1, 16], strides = [1, 1]} : vector<8x16xf32> to vector<1x16xf32>
    %117 = vector.broadcast %115 : vector<8x1xf32> to vector<8x16xf32>
    %118 = vector.broadcast %116 : vector<1x16xf32> to vector<8x16xf32>
    %119 = arith.mulf %117, %118 : vector<8x16xf32>
    %120 = vector.extract_strided_slice %4 {offsets = [0, 5], sizes = [8, 1], strides = [1, 1]} : vector<8x24xf32> to vector<8x1xf32>
    %121 = vector.extract_strided_slice %94 {offsets = [5, 0], sizes = [1, 16], strides = [1, 1]} : vector<8x16xf32> to vector<1x16xf32>
    %122 = vector.broadcast %120 : vector<8x1xf32> to vector<8x16xf32>
    %123 = vector.broadcast %121 : vector<1x16xf32> to vector<8x16xf32>
    %124 = arith.mulf %122, %123 : vector<8x16xf32>
    %125 = vector.extract_strided_slice %4 {offsets = [0, 6], sizes = [8, 1], strides = [1, 1]} : vector<8x24xf32> to vector<8x1xf32>
    %126 = vector.extract_strided_slice %94 {offsets = [6, 0], sizes = [1, 16], strides = [1, 1]} : vector<8x16xf32> to vector<1x16xf32>
    %127 = vector.broadcast %125 : vector<8x1xf32> to vector<8x16xf32>
    %128 = vector.broadcast %126 : vector<1x16xf32> to vector<8x16xf32>
    %129 = arith.mulf %127, %128 : vector<8x16xf32>
    %130 = vector.extract_strided_slice %4 {offsets = [0, 7], sizes = [8, 1], strides = [1, 1]} : vector<8x24xf32> to vector<8x1xf32>
    %131 = vector.extract_strided_slice %94 {offsets = [7, 0], sizes = [1, 16], strides = [1, 1]} : vector<8x16xf32> to vector<1x16xf32>
    %132 = vector.broadcast %130 : vector<8x1xf32> to vector<8x16xf32>
    %133 = vector.broadcast %131 : vector<1x16xf32> to vector<8x16xf32>
    %134 = arith.mulf %132, %133 : vector<8x16xf32>
    %135 = vector.extract_strided_slice %93 {offsets = [0, 1], sizes = [8, 16], strides = [1, 1]} : vector<8x18xf32> to vector<8x16xf32>
    %136 = vector.extract_strided_slice %4 {offsets = [0, 8], sizes = [8, 1], strides = [1, 1]} : vector<8x24xf32> to vector<8x1xf32>
    %137 = vector.extract_strided_slice %135 {offsets = [0, 0], sizes = [1, 16], strides = [1, 1]} : vector<8x16xf32> to vector<1x16xf32>
    %138 = vector.broadcast %136 : vector<8x1xf32> to vector<8x16xf32>
    %139 = vector.broadcast %137 : vector<1x16xf32> to vector<8x16xf32>
    %140 = arith.mulf %138, %139 : vector<8x16xf32>
    %141 = vector.extract_strided_slice %4 {offsets = [0, 9], sizes = [8, 1], strides = [1, 1]} : vector<8x24xf32> to vector<8x1xf32>
    %142 = vector.extract_strided_slice %135 {offsets = [1, 0], sizes = [1, 16], strides = [1, 1]} : vector<8x16xf32> to vector<1x16xf32>
    %143 = vector.broadcast %141 : vector<8x1xf32> to vector<8x16xf32>
    %144 = vector.broadcast %142 : vector<1x16xf32> to vector<8x16xf32>
    %145 = arith.mulf %143, %144 : vector<8x16xf32>
    %146 = vector.extract_strided_slice %4 {offsets = [0, 10], sizes = [8, 1], strides = [1, 1]} : vector<8x24xf32> to vector<8x1xf32>
    %147 = vector.extract_strided_slice %135 {offsets = [2, 0], sizes = [1, 16], strides = [1, 1]} : vector<8x16xf32> to vector<1x16xf32>
    %148 = vector.broadcast %146 : vector<8x1xf32> to vector<8x16xf32>
    %149 = vector.broadcast %147 : vector<1x16xf32> to vector<8x16xf32>
    %150 = arith.mulf %148, %149 : vector<8x16xf32>
    %151 = vector.extract_strided_slice %4 {offsets = [0, 11], sizes = [8, 1], strides = [1, 1]} : vector<8x24xf32> to vector<8x1xf32>
    %152 = vector.extract_strided_slice %135 {offsets = [3, 0], sizes = [1, 16], strides = [1, 1]} : vector<8x16xf32> to vector<1x16xf32>
    %153 = vector.broadcast %151 : vector<8x1xf32> to vector<8x16xf32>
    %154 = vector.broadcast %152 : vector<1x16xf32> to vector<8x16xf32>
    %155 = arith.mulf %153, %154 : vector<8x16xf32>
    %156 = vector.extract_strided_slice %4 {offsets = [0, 12], sizes = [8, 1], strides = [1, 1]} : vector<8x24xf32> to vector<8x1xf32>
    %157 = vector.extract_strided_slice %135 {offsets = [4, 0], sizes = [1, 16], strides = [1, 1]} : vector<8x16xf32> to vector<1x16xf32>
    %158 = vector.broadcast %156 : vector<8x1xf32> to vector<8x16xf32>
    %159 = vector.broadcast %157 : vector<1x16xf32> to vector<8x16xf32>
    %160 = arith.mulf %158, %159 : vector<8x16xf32>
    %161 = vector.extract_strided_slice %4 {offsets = [0, 13], sizes = [8, 1], strides = [1, 1]} : vector<8x24xf32> to vector<8x1xf32>
    %162 = vector.extract_strided_slice %135 {offsets = [5, 0], sizes = [1, 16], strides = [1, 1]} : vector<8x16xf32> to vector<1x16xf32>
    %163 = vector.broadcast %161 : vector<8x1xf32> to vector<8x16xf32>
    %164 = vector.broadcast %162 : vector<1x16xf32> to vector<8x16xf32>
    %165 = arith.mulf %163, %164 : vector<8x16xf32>
    %166 = vector.extract_strided_slice %4 {offsets = [0, 14], sizes = [8, 1], strides = [1, 1]} : vector<8x24xf32> to vector<8x1xf32>
    %167 = vector.extract_strided_slice %135 {offsets = [6, 0], sizes = [1, 16], strides = [1, 1]} : vector<8x16xf32> to vector<1x16xf32>
    %168 = vector.broadcast %166 : vector<8x1xf32> to vector<8x16xf32>
    %169 = vector.broadcast %167 : vector<1x16xf32> to vector<8x16xf32>
    %170 = arith.mulf %168, %169 : vector<8x16xf32>
    %171 = vector.extract_strided_slice %4 {offsets = [0, 15], sizes = [8, 1], strides = [1, 1]} : vector<8x24xf32> to vector<8x1xf32>
    %172 = vector.extract_strided_slice %135 {offsets = [7, 0], sizes = [1, 16], strides = [1, 1]} : vector<8x16xf32> to vector<1x16xf32>
    %173 = vector.broadcast %171 : vector<8x1xf32> to vector<8x16xf32>
    %174 = vector.broadcast %172 : vector<1x16xf32> to vector<8x16xf32>
    %175 = arith.mulf %173, %174 : vector<8x16xf32>
    %176 = vector.extract_strided_slice %93 {offsets = [0, 2], sizes = [8, 16], strides = [1, 1]} : vector<8x18xf32> to vector<8x16xf32>
    %177 = vector.extract_strided_slice %4 {offsets = [0, 16], sizes = [8, 1], strides = [1, 1]} : vector<8x24xf32> to vector<8x1xf32>
    %178 = vector.extract_strided_slice %176 {offsets = [0, 0], sizes = [1, 16], strides = [1, 1]} : vector<8x16xf32> to vector<1x16xf32>
    %179 = vector.broadcast %177 : vector<8x1xf32> to vector<8x16xf32>
    %180 = vector.broadcast %178 : vector<1x16xf32> to vector<8x16xf32>
    %181 = arith.mulf %179, %180 : vector<8x16xf32>
    %182 = vector.extract_strided_slice %4 {offsets = [0, 17], sizes = [8, 1], strides = [1, 1]} : vector<8x24xf32> to vector<8x1xf32>
    %183 = vector.extract_strided_slice %176 {offsets = [1, 0], sizes = [1, 16], strides = [1, 1]} : vector<8x16xf32> to vector<1x16xf32>
    %184 = vector.broadcast %182 : vector<8x1xf32> to vector<8x16xf32>
    %185 = vector.broadcast %183 : vector<1x16xf32> to vector<8x16xf32>
    %186 = arith.mulf %184, %185 : vector<8x16xf32>
    %187 = vector.extract_strided_slice %4 {offsets = [0, 18], sizes = [8, 1], strides = [1, 1]} : vector<8x24xf32> to vector<8x1xf32>
    %188 = vector.extract_strided_slice %176 {offsets = [2, 0], sizes = [1, 16], strides = [1, 1]} : vector<8x16xf32> to vector<1x16xf32>
    %189 = vector.broadcast %187 : vector<8x1xf32> to vector<8x16xf32>
    %190 = vector.broadcast %188 : vector<1x16xf32> to vector<8x16xf32>
    %191 = arith.mulf %189, %190 : vector<8x16xf32>
    %192 = vector.extract_strided_slice %4 {offsets = [0, 19], sizes = [8, 1], strides = [1, 1]} : vector<8x24xf32> to vector<8x1xf32>
    %193 = vector.extract_strided_slice %176 {offsets = [3, 0], sizes = [1, 16], strides = [1, 1]} : vector<8x16xf32> to vector<1x16xf32>
    %194 = vector.broadcast %192 : vector<8x1xf32> to vector<8x16xf32>
    %195 = vector.broadcast %193 : vector<1x16xf32> to vector<8x16xf32>
    %196 = arith.mulf %194, %195 : vector<8x16xf32>
    %197 = vector.extract_strided_slice %4 {offsets = [0, 20], sizes = [8, 1], strides = [1, 1]} : vector<8x24xf32> to vector<8x1xf32>
    %198 = vector.extract_strided_slice %176 {offsets = [4, 0], sizes = [1, 16], strides = [1, 1]} : vector<8x16xf32> to vector<1x16xf32>
    %199 = vector.broadcast %197 : vector<8x1xf32> to vector<8x16xf32>
    %200 = vector.broadcast %198 : vector<1x16xf32> to vector<8x16xf32>
    %201 = arith.mulf %199, %200 : vector<8x16xf32>
    %202 = vector.extract_strided_slice %4 {offsets = [0, 21], sizes = [8, 1], strides = [1, 1]} : vector<8x24xf32> to vector<8x1xf32>
    %203 = vector.extract_strided_slice %176 {offsets = [5, 0], sizes = [1, 16], strides = [1, 1]} : vector<8x16xf32> to vector<1x16xf32>
    %204 = vector.broadcast %202 : vector<8x1xf32> to vector<8x16xf32>
    %205 = vector.broadcast %203 : vector<1x16xf32> to vector<8x16xf32>
    %206 = arith.mulf %204, %205 : vector<8x16xf32>
    %207 = vector.extract_strided_slice %4 {offsets = [0, 22], sizes = [8, 1], strides = [1, 1]} : vector<8x24xf32> to vector<8x1xf32>
    %208 = vector.extract_strided_slice %176 {offsets = [6, 0], sizes = [1, 16], strides = [1, 1]} : vector<8x16xf32> to vector<1x16xf32>
    %209 = vector.broadcast %207 : vector<8x1xf32> to vector<8x16xf32>
    %210 = vector.broadcast %208 : vector<1x16xf32> to vector<8x16xf32>
    %211 = arith.mulf %209, %210 : vector<8x16xf32>
    %212 = vector.extract_strided_slice %4 {offsets = [0, 23], sizes = [8, 1], strides = [1, 1]} : vector<8x24xf32> to vector<8x1xf32>
    %213 = vector.extract_strided_slice %176 {offsets = [7, 0], sizes = [1, 16], strides = [1, 1]} : vector<8x16xf32> to vector<1x16xf32>
    %214 = vector.broadcast %212 : vector<8x1xf32> to vector<8x16xf32>
    %215 = vector.broadcast %213 : vector<1x16xf32> to vector<8x16xf32>
    %216 = arith.mulf %214, %215 : vector<8x16xf32>
    %217 = arith.addf %99, %104 : vector<8x16xf32>
    %218 = arith.addf %109, %114 : vector<8x16xf32>
    %219 = arith.addf %119, %124 : vector<8x16xf32>
    %220 = arith.addf %129, %134 : vector<8x16xf32>
    %221 = arith.addf %140, %145 : vector<8x16xf32>
    %222 = arith.addf %150, %155 : vector<8x16xf32>
    %223 = arith.addf %160, %165 : vector<8x16xf32>
    %224 = arith.addf %170, %175 : vector<8x16xf32>
    %225 = arith.addf %181, %186 : vector<8x16xf32>
    %226 = arith.addf %191, %196 : vector<8x16xf32>
    %227 = arith.addf %201, %206 : vector<8x16xf32>
    %228 = arith.addf %211, %216 : vector<8x16xf32>
    %229 = arith.addf %217, %218 : vector<8x16xf32>
    %230 = arith.addf %219, %220 : vector<8x16xf32>
    %231 = arith.addf %221, %222 : vector<8x16xf32>
    %232 = arith.addf %223, %224 : vector<8x16xf32>
    %233 = arith.addf %225, %226 : vector<8x16xf32>
    %234 = arith.addf %227, %228 : vector<8x16xf32>
    %235 = arith.addf %229, %230 : vector<8x16xf32>
    %236 = arith.addf %231, %232 : vector<8x16xf32>
    %237 = arith.addf %233, %234 : vector<8x16xf32>
    %238 = arith.addf %235, %236 : vector<8x16xf32>
    %239 = arith.addf %238, %237 : vector<8x16xf32>
    %240 = vector.broadcast %5 : vector<8x1xf32> to vector<8x16xf32>
    %241 = arith.addf %239, %240 : vector<8x16xf32>
    %242 = arith.addf %241, %82 : vector<8x16xf32>
    %cst_11 = arith.constant 0.000000e+00 : f32
    %243 = vector.broadcast %cst_11 : f32 to vector<8x16xf32>
    %244 = arith.maximumf %242, %243 : vector<8x16xf32>
    %c0_12 = arith.constant 0 : index
    %c0_13 = arith.constant 0 : index
    %c0_14 = arith.constant 0 : index
    %245 = vector.load %arg6[%c0_12, %c0_13, %c0_14] : memref<1x8x16xf32, #tpu.memory_space<vmem>>, vector<1x8x16xf32>
    %246 = vector.shape_cast %245 : vector<1x8x16xf32> to vector<8x16xf32>
    %247 = vector.shape_cast %244 : vector<8x16xf32> to vector<1x8x16xf32>
    tpu.vector_store %arg6[%c0_12, %c0_13, %c0_14], %247 {strides = array<i32>} : memref<1x8x16xf32, #tpu.memory_space<vmem>>, vector<1x8x16xf32>,
    return
  }
  func.func @transform_0(%arg0: i32) -> (i32, i32, i32) {
    %c0_i32 = arith.constant 0 : i32
    %c0_i32_0 = arith.constant 0 : i32
    %c0_i32_1 = arith.constant 0 : i32
    return %arg0, %c0_i32, %c0_i32_0 : i32, i32, i32
  }
  func.func @transform_1(%arg0: i32) -> (i32, i32) {
    %c0_i32 = arith.constant 0 : i32
    %c0_i32_0 = arith.constant 0 : i32
    %c0_i32_1 = arith.constant 0 : i32
    return %c0_i32, %c0_i32_0 : i32, i32
  }
  func.func @transform_2(%arg0: i32) -> (i32, i32) {
    %c0_i32 = arith.constant 0 : i32
    %c0_i32_0 = arith.constant 0 : i32
    %c0_i32_1 = arith.constant 0 : i32
    return %c0_i32, %c0_i32_0 : i32, i32
  }
  func.func @transform_3(%arg0: i32) -> (i32, i32) {
    %c0_i32 = arith.constant 0 : i32
    %c0_i32_0 = arith.constant 0 : i32
    %c0_i32_1 = arith.constant 0 : i32
    return %c0_i32, %c0_i32_0 : i32, i32
  }
  func.func @transform_4(%arg0: i32) -> (i32, i32) {
    %c0_i32 = arith.constant 0 : i32
    %c0_i32_0 = arith.constant 0 : i32
    %c0_i32_1 = arith.constant 0 : i32
    return %c0_i32, %c0_i32_0 : i32, i32
  }
  func.func @transform_5(%arg0: i32) -> (i32, i32, i32) {
    %c0_i32 = arith.constant 0 : i32
    %c0_i32_0 = arith.constant 0 : i32
    %c0_i32_1 = arith.constant 0 : i32
    return %arg0, %c0_i32, %c0_i32_0 : i32, i32, i32
  }
}

</mosaic_0001>

<llo_original>
// kernel: tpu_custom_call.1
$region0: #{tpu_custom_call.1}
  #allocation0 [shape = 'u32[]', space=smem, size = 0x4, offset = 0x4, fixed_abs, tag = 'smem constant byte address 0x4 - core index']
  #allocation1 [shape = 'u32[144,128]{1,0:T(1,128)}', space=vmem, size = 0x12000, scoped, tag = 'internal scratch']
  %s0 = inlined_call_operand.vmem [shape: f32[2,4,20], index: 0, kind: input, shape index: {}]
  %s1 = inlined_call_operand.vmem [shape: f32[16,12], index: 1, kind: input, shape index: {}]
  %s2 = inlined_call_operand.vmem [shape: f32[16,1], index: 2, kind: input, shape index: {}]
  %s3 = inlined_call_operand.hbm [shape: f32[8,24], index: 3, kind: input, shape index: {}]
  %s4 = inlined_call_operand.vmem [shape: f32[8,1], index: 4, kind: input, shape index: {}]
  %s5 = inlined_call_operand.hbm [shape: f32[2,8,16], index: 5, kind: output, shape index: {}]
  %s6 = sld [smem:[#allocation0]]
  $region57: #{tpu_custom_call.1} parent=0
    _
  %s8 = ssub.s32 1, %s6
  %s9 = scalar_select 0, %s8, %s6
  $region1: #{tpu_custom_call.1} parent=0
    #allocation2 [shape = 'u8[4096]{0}', space=vmem, size = 0x1000, scoped, tag = 'input window, operand 3, single buffered']
    #allocation3 [shape = 's32[2]{0}', space=sflag, size = 0x8, scoped, tag = 'scoped memory for tpu_custom_call.1']
    #allocation4 [shape = 's32[2]{0}', space=sflag, size = 0x8, scoped, tag = 'scoped memory for tpu_custom_call.1']
    #allocation5 [shape = 'u8[8192]{0}', space=vmem, size = 0x2000, scoped, tag = 'output window, operand 0']
    %10 = vsyncpa [#allocation3], 0
    %11 = vsyncpa [#allocation4], 0
    %s12 = scalar_lea.sflag [#allocation4], 1
    %13 = vsyncpa %s12, 0
    loop: start=0, step=1, limit=4
    $region2: #{tpu_custom_call.1} parent=1 // loop_pre_header
      _
    $region3: #{tpu_custom_call.1} parent=1 // loop_header
      %s15 = sphi 0, %s19
      %p16 = scmp.ge.s32.totalorder %s15, 4
      %s25 = sphi 0, %s27
      %s28 = sphi 0, %s25
      %s29 = sphi 0, %s28
      %s45 = sphi 0, %s29
      %s49 = sphi 0, %s49
      %s51 = sphi 0, %s49
      %s52 = sphi 0, %s51
      %s66 = sphi 0, %s52
      %s70 = sphi 0, %s70
      %s72 = sphi 0, %s70
      %s73 = sphi 0, %s72
      %s87 = sphi 0, %s73
      %s91 = sphi 0, %s91
      %s93 = sphi 0, %s91
      %s94 = sphi 0, %s93
      %s108 = sphi 0, %s94
      %s112 = sphi 0, %s112
      %s114 = sphi 0, %s112
      %s115 = sphi 0, %s114
      %s129 = sphi 0, %s115
      %s135 = sphi 0, %s137
      %s138 = sphi 0, %s135
      %s139 = sphi 0, %s138
      %s155 = sphi 0, %s139
    $region4: #{tpu_custom_call.1} parent=1 // loop_header_branch
      %18 = sbr.rel (%p16) target = $region8
    $region5: #{tpu_custom_call.1} parent=1 // loop_body
      %s20 = ssub.s32 %s15, 1
      %s21 = ssub.s32 %s15, 2
      %s22 = sadd.s32 %s15, 1
      %s23 = ssub.s32 %s15, %s22
      %p24 = scmp.eq.s32.totalorder %s23, 0
      %s26 = sadd.s32 %s25, 1
      %s27 = scalar_select %p24, %s25, %s26
      %p30 = pneg %p24
      %p31 = scmp.eq.s32.totalorder %s15, 1
      %p32 = por %p30, %p31
      %p33 = scmp.ne.s32.totalorder %s25, %s28
      %p34 = scmp.eq.s32.totalorder %s15, 0
      %p35 = por %p33, %p34
      %p36 = scmp.ne.s32.totalorder %s25, %s28
      %p37 = scmp.eq.s32.totalorder %s20, 1
      %p38 = por %p36, %p37
      %p39 = scmp.ne.s32.totalorder %s28, %s29
      %p40 = scmp.eq.s32.totalorder %s20, 0
      %p41 = por %p39, %p40
      %p42 = scmp.ne.s32.totalorder %s28, %s29
      %p43 = scmp.eq.s32.totalorder %s21, 1
      %p44 = por %p42, %p43
      %p46 = scmp.ne.s32.totalorder %s29, %s45
      %p47 = scmp.eq.s32.totalorder %s21, 0
      %p48 = por %p46, %p47
      %s50 = sadd.s32 %s49, 1
      %p53 = scmp.eq.s32.totalorder %s15, 1
      %p54 = scmp.ne.s32.totalorder %s49, %s51
      %p55 = scmp.eq.s32.totalorder %s15, 0
      %p56 = por %p54, %p55
      %p57 = scmp.ne.s32.totalorder %s49, %s51
      %p58 = scmp.eq.s32.totalorder %s20, 1
      %p59 = por %p57, %p58
      %p60 = scmp.ne.s32.totalorder %s51, %s52
      %p61 = scmp.eq.s32.totalorder %s20, 0
      %p62 = por %p60, %p61
      %p63 = scmp.ne.s32.totalorder %s51, %s52
      %p64 = scmp.eq.s32.totalorder %s21, 1
      %p65 = por %p63, %p64
      %p67 = scmp.ne.s32.totalorder %s52, %s66
      %p68 = scmp.eq.s32.totalorder %s21, 0
      %p69 = por %p67, %p68
      %s71 = sadd.s32 %s70, 1
      %p74 = scmp.eq.s32.totalorder %s15, 1
      %p75 = scmp.ne.s32.totalorder %s70, %s72
      %p76 = scmp.eq.s32.totalorder %s15, 0
      %p77 = por %p75, %p76
      %p78 = scmp.ne.s32.totalorder %s70, %s72
      %p79 = scmp.eq.s32.totalorder %s20, 1
      %p80 = por %p78, %p79
      %p81 = scmp.ne.s32.totalorder %s72, %s73
      %p82 = scmp.eq.s32.totalorder %s20, 0
      %p83 = por %p81, %p82
      %p84 = scmp.ne.s32.totalorder %s72, %s73
      %p85 = scmp.eq.s32.totalorder %s21, 1
      %p86 = por %p84, %p85
      %p88 = scmp.ne.s32.totalorder %s73, %s87
      %p89 = scmp.eq.s32.totalorder %s21, 0
      %p90 = por %p88, %p89
      %s92 = sadd.s32 %s91, 1
      %p95 = scmp.eq.s32.totalorder %s15, 1
      %p96 = scmp.ne.s32.totalorder %s91, %s93
      %p97 = scmp.eq.s32.totalorder %s15, 0
      %p98 = por %p96, %p97
      %p99 = scmp.ne.s32.totalorder %s91, %s93
      %p100 = scmp.eq.s32.totalorder %s20, 1
      %p101 = por %p99, %p100
      %p102 = scmp.ne.s32.totalorder %s93, %s94
      %p103 = scmp.eq.s32.totalorder %s20, 0
      %p104 = por %p102, %p103
      %p105 = scmp.ne.s32.totalorder %s93, %s94
      %p106 = scmp.eq.s32.totalorder %s21, 1
      %p107 = por %p105, %p106
      %p109 = scmp.ne.s32.totalorder %s94, %s108
      %p110 = scmp.eq.s32.totalorder %s21, 0
      %p111 = por %p109, %p110
      %s113 = sadd.s32 %s112, 1
      %p116 = scmp.eq.s32.totalorder %s15, 1
      %p117 = scmp.ne.s32.totalorder %s112, %s114
      %p118 = scmp.eq.s32.totalorder %s15, 0
      %p119 = por %p117, %p118
      %p120 = scmp.ne.s32.totalorder %s112, %s114
      %p121 = scmp.eq.s32.totalorder %s20, 1
      %p122 = por %p120, %p121
      %p123 = scmp.ne.s32.totalorder %s114, %s115
      %p124 = scmp.eq.s32.totalorder %s20, 0
      %p125 = por %p123, %p124
      %p126 = scmp.ne.s32.totalorder %s114, %s115
      %p127 = scmp.eq.s32.totalorder %s21, 1
      %p128 = por %p126, %p127
      %p130 = scmp.ne.s32.totalorder %s115, %s129
      %p131 = scmp.eq.s32.totalorder %s21, 0
      %p132 = por %p130, %p131
      %s133 = ssub.s32 %s15, %s22
      %p134 = scmp.eq.s32.totalorder %s133, 0
      %s136 = sadd.s32 %s135, 1
      %s137 = scalar_select %p134, %s135, %s136
      %p140 = pneg %p134
      %p141 = scmp.eq.s32.totalorder %s15, 1
      %p142 = por %p140, %p141
      %p143 = scmp.ne.s32.totalorder %s135, %s138
      %p144 = scmp.eq.s32.totalorder %s15, 0
      %p145 = por %p143, %p144
      %p146 = scmp.ne.s32.totalorder %s135, %s138
      %p147 = scmp.eq.s32.totalorder %s20, 1
      %p148 = por %p146, %p147
      %p149 = scmp.ne.s32.totalorder %s138, %s139
      %p150 = scmp.eq.s32.totalorder %s20, 0
      %p151 = por %p149, %p150
      %p152 = scmp.ne.s32.totalorder %s138, %s139
      %p153 = scmp.eq.s32.totalorder %s21, 1
      %p154 = por %p152, %p153
      %p156 = scmp.ne.s32.totalorder %s139, %s155
      %p157 = scmp.eq.s32.totalorder %s21, 0
      %p158 = por %p156, %p157
      %p159 = scmp.le.s32.totalorder 1, %s15
      %p160 = scmp.lt.s32.totalorder %s15, 3
      %p161 = pnand %p159, %p160
      %p162 = pneg %p161
      // Predicated region
      $region9: #{tpu_custom_call.1} parent=5 // pred_check
        _
      $region10: #{tpu_custom_call.1} parent=5 // pred_check_branch
        %164 = sbr.rel (%p161) target = $region12
      $region11: #{tpu_custom_call.1} parent=5 // pred_region
        %s165 = ssub.s32 %s15, 1
        // Predicated region
        $region13: #{tpu_custom_call.1} parent=11 // pred_check
          %p166 = pneg %p62
        $region14: #{tpu_custom_call.1} parent=11 // pred_check_branch
          %168 = sbr.rel (%p166) target = $region16
        $region15: #{tpu_custom_call.1} parent=11 // pred_region
          _
        $region16: #{tpu_custom_call.1} parent=11 // pred_fallthru
          _
        // Predicated region
        $region17: #{tpu_custom_call.1} parent=11 // pred_check
          %p169 = pneg %p83
        $region18: #{tpu_custom_call.1} parent=11 // pred_check_branch
          %171 = sbr.rel (%p169) target = $region20
        $region19: #{tpu_custom_call.1} parent=11 // pred_region
          _
        $region20: #{tpu_custom_call.1} parent=11 // pred_fallthru
          _
        // Predicated region
        $region21: #{tpu_custom_call.1} parent=11 // pred_check
          %p172 = pneg %p104
        $region22: #{tpu_custom_call.1} parent=11 // pred_check_branch
          %174 = sbr.rel (%p172) target = $region24
        $region23: #{tpu_custom_call.1} parent=11 // pred_region
          %s176 = ssub.s32 128, 128
          %177 = vsyncadd [#allocation3], %s176
          %s179 = sshll.u32 [#allocation2], 4
          %s180 = int_to_ptr.vmem [resolvable:$true] %s179
          %182 = dma.hbm_to_vmem [thread:$0]  %s3, 128, %s180, [#allocation3]
        $region24: #{tpu_custom_call.1} parent=11 // pred_fallthru
          _
        // Predicated region
        $region25: #{tpu_custom_call.1} parent=11 // pred_check
          %p183 = pneg %p125
        $region26: #{tpu_custom_call.1} parent=11 // pred_check_branch
          %185 = sbr.rel (%p183) target = $region28
        $region27: #{tpu_custom_call.1} parent=11 // pred_region
          _
        $region28: #{tpu_custom_call.1} parent=11 // pred_fallthru
          _
      $region12: #{tpu_custom_call.1} parent=5 // pred_fallthru
        _
      %p186 = scmp.lt.s32.totalorder %s15, 2
      // Predicated region
      $region29: #{tpu_custom_call.1} parent=5 // pred_check
        %p187 = pneg %p186
      $region30: #{tpu_custom_call.1} parent=5 // pred_check_branch
        %189 = sbr.rel (%p187) target = $region32
      $region31: #{tpu_custom_call.1} parent=5 // pred_region
        // Predicated region
        $region33: #{tpu_custom_call.1} parent=31 // pred_check
          %p190 = pneg %p35
        $region34: #{tpu_custom_call.1} parent=31 // pred_check_branch
          %192 = sbr.rel (%p190) target = $region36
        $region35: #{tpu_custom_call.1} parent=31 // pred_region
          %p193 = scmp.lt.s32.totalorder %s15, 1
          %s194 = scalar_select %p193, %s15, 1
          %s195 = smul.addr %s194, 4
          %s196 = scalar_lea.vmem %s0, %s195
        $region36: #{tpu_custom_call.1} parent=31 // pred_fallthru
          _
      $region32: #{tpu_custom_call.1} parent=5 // pred_fallthru
        _
      %p197 = scmp.le.s32.totalorder 1, %s15
      %p198 = scmp.lt.s32.totalorder %s15, 3
      %p199 = pnand %p197, %p198
      %p200 = pneg %p199
      // Predicated region
      $region37: #{tpu_custom_call.1} parent=5 // pred_check
        _
      $region38: #{tpu_custom_call.1} parent=5 // pred_check_branch
        %202 = sbr.rel (%p199) target = $region40
      $region39: #{tpu_custom_call.1} parent=5 // pred_region
        %s203 = ssub.s32 %s15, 1
        // Predicated region
        $region41: #{tpu_custom_call.1} parent=39 // pred_check
          %p204 = pneg %p104
        $region42: #{tpu_custom_call.1} parent=39 // pred_check_branch
          %206 = sbr.rel (%p204) target = $region44
        $region43: #{tpu_custom_call.1} parent=39 // pred_region
          %207 = dma.done [#allocation3], 128
        $region44: #{tpu_custom_call.1} parent=39 // pred_fallthru
          _
        %p208 = scmp.lt.s32.totalorder %s20, 1
        %s209 = scalar_select %p208, %s20, 1
        %s210 = smul.addr %s209, 4
        %s211 = scalar_lea.vmem %s0, %s210
        %p212 = pneg %p41
        %p213 = pneg %p38
        %p214 = pneg %p62
        %p215 = pneg %p59
        %p216 = pneg %p83
        %p217 = pneg %p80
        %p218 = pneg %p104
        %p219 = pneg %p101
        %p220 = pneg %p125
        %p221 = pneg %p122
        %p222 = pneg %p151
        %p223 = pneg %p148
        %s224 = sand.u32 %s138, 1
        %s225 = scalar_lea.sflag [#allocation4], %s224
        %s226 = sand.u32 %s138, 1
        %s227 = smul.addr %s226, 8
        %s228 = scalar_lea.vmem [#allocation5], %s227
        %p229 = scmp.lt.s32.totalorder %s20, 1
        %s230 = scalar_select %p229, %s20, 1
        %s231 = smul.addr %s230, 4
        %s232 = scalar_lea.vmem %s0, %s231
        %v233 = vld [vmem:[%s232] sm:$0xf]
        %v234 = vld [vmem:[%s1] sm:$0xff]
        %v235 = vld [vmem:[%s1 + $0x8] sm:$0xff]
        %v236 = vld [vmem:[%s2] sm:$0xff]
        %v237 = vld [vmem:[%s2 + $0x8] sm:$0xff]
        %v238 = vld [vmem:[#allocation2] sm:$0xff]
        %v239 = vld [vmem:[%s4] sm:$0xff]
        %241 = vset.pattern.permute.xlu0 0
        %242 = vperm.xlu0 %241, %v234
        %v243 = vpop.permute.xlu0 %242
        %246 = vset.pattern.permute.xlu0 0
        %247 = vperm.xlu0 %246, %v235
        %v248 = vpop.permute.xlu0 %247
        %v250 = vlaneseq
        %v251 = vshrl.u32 %v250, 7
        %v252 = vsub.s32 0, %v251
        %v253 = vrot.slane %v233, %v252
        %v254 = vmul.f32 %v243, %v253
        %v255 = vmul.f32 %v248, %v253
        %256 = vset.pattern.permute.xlu0 1
        %257 = vperm.xlu0 %256, %v234
        %v258 = vpop.permute.xlu0 %257
        %260 = vset.pattern.permute.xlu0 1
        %261 = vperm.xlu0 %260, %v235
        %v262 = vpop.permute.xlu0 %261
        %v264 = vlaneseq
        %v265 = vshrl.u32 %v264, 7
        %v266 = vsub.s32 1, %v265
        %v267 = vrot.slane %v233, %v266
        %v268 = vmul.f32 %v258, %v267
        %v269 = vmul.f32 %v262, %v267
        %270 = vset.pattern.permute.xlu0 2
        %271 = vperm.xlu0 %270, %v234
        %v272 = vpop.permute.xlu0 %271
        %274 = vset.pattern.permute.xlu0 2
        %275 = vperm.xlu0 %274, %v235
        %v276 = vpop.permute.xlu0 %275
        %v278 = vlaneseq
        %v279 = vshrl.u32 %v278, 7
        %v280 = vsub.s32 2, %v279
        %v281 = vrot.slane %v233, %v280
        %v282 = vmul.f32 %v272, %v281
        %v283 = vmul.f32 %v276, %v281
        %284 = vset.pattern.permute.xlu0 3
        %285 = vperm.xlu0 %284, %v234
        %v286 = vpop.permute.xlu0 %285
        %288 = vset.pattern.permute.xlu0 3
        %289 = vperm.xlu0 %288, %v235
        %v290 = vpop.permute.xlu0 %289
        %v292 = vlaneseq
        %v293 = vshrl.u32 %v292, 7
        %v294 = vsub.s32 3, %v293
        %v295 = vrot.slane %v233, %v294
        %v296 = vmul.f32 %v286, %v295
        %v297 = vmul.f32 %v290, %v295
        %298 = vset.pattern.permute.xlu0 4
        %299 = vperm.xlu0 %298, %v234
        %v300 = vpop.permute.xlu0 %299
        %302 = vset.pattern.permute.xlu0 4
        %303 = vperm.xlu0 %302, %v235
        %v304 = vpop.permute.xlu0 %303
        %v306 = vmul.f32 %v300, %v253
        %v307 = vmul.f32 %v304, %v253
        %308 = vset.pattern.permute.xlu0 5
        %309 = vperm.xlu0 %308, %v234
        %v310 = vpop.permute.xlu0 %309
        %312 = vset.pattern.permute.xlu0 5
        %313 = vperm.xlu0 %312, %v235
        %v314 = vpop.permute.xlu0 %313
        %v316 = vmul.f32 %v310, %v267
        %v317 = vmul.f32 %v314, %v267
        %318 = vset.pattern.permute.xlu0 6
        %319 = vperm.xlu0 %318, %v234
        %v320 = vpop.permute.xlu0 %319
        %322 = vset.pattern.permute.xlu0 6
        %323 = vperm.xlu0 %322, %v235
        %v324 = vpop.permute.xlu0 %323
        %v326 = vmul.f32 %v320, %v281
        %v327 = vmul.f32 %v324, %v281
        %328 = vset.pattern.permute.xlu0 7
        %329 = vperm.xlu0 %328, %v234
        %v330 = vpop.permute.xlu0 %329
        %332 = vset.pattern.permute.xlu0 7
        %333 = vperm.xlu0 %332, %v235
        %v334 = vpop.permute.xlu0 %333
        %v336 = vmul.f32 %v330, %v295
        %v337 = vmul.f32 %v334, %v295
        %338 = vset.pattern.permute.xlu0 8
        %339 = vperm.xlu0 %338, %v234
        %v340 = vpop.permute.xlu0 %339
        %342 = vset.pattern.permute.xlu0 8
        %343 = vperm.xlu0 %342, %v235
        %v344 = vpop.permute.xlu0 %343
        %v346 = vmul.f32 %v340, %v253
        %v347 = vmul.f32 %v344, %v253
        %348 = vset.pattern.permute.xlu0 9
        %349 = vperm.xlu0 %348, %v234
        %v350 = vpop.permute.xlu0 %349
        %352 = vset.pattern.permute.xlu0 9
        %353 = vperm.xlu0 %352, %v235
        %v354 = vpop.permute.xlu0 %353
        %v356 = vmul.f32 %v350, %v267
        %v357 = vmul.f32 %v354, %v267
        %358 = vset.pattern.permute.xlu0 10
        %359 = vperm.xlu0 %358, %v234
        %v360 = vpop.permute.xlu0 %359
        %362 = vset.pattern.permute.xlu0 10
        %363 = vperm.xlu0 %362, %v235
        %v364 = vpop.permute.xlu0 %363
        %v366 = vmul.f32 %v360, %v281
        %v367 = vmul.f32 %v364, %v281
        %368 = vset.pattern.permute.xlu0 11
        %369 = vperm.xlu0 %368, %v234
        %v370 = vpop.permute.xlu0 %369
        %372 = vset.pattern.permute.xlu0 11
        %373 = vperm.xlu0 %372, %v235
        %v374 = vpop.permute.xlu0 %373
        %v376 = vmul.f32 %v370, %v295
        %v377 = vmul.f32 %v374, %v295
        %v378 = vadd.f32 %v254, %v268
        %v379 = vadd.f32 %v255, %v269
        %v380 = vadd.f32 %v282, %v296
        %v381 = vadd.f32 %v283, %v297
        %v382 = vadd.f32 %v306, %v316
        %v383 = vadd.f32 %v307, %v317
        %v384 = vadd.f32 %v326, %v336
        %v385 = vadd.f32 %v327, %v337
        %v386 = vadd.f32 %v346, %v356
        %v387 = vadd.f32 %v347, %v357
        %v388 = vadd.f32 %v366, %v376
        %v389 = vadd.f32 %v367, %v377
        %v390 = vadd.f32 %v378, %v380
        %v391 = vadd.f32 %v379, %v381
        %v392 = vadd.f32 %v382, %v384
        %v393 = vadd.f32 %v383, %v385
        %v394 = vadd.f32 %v386, %v388
        %v395 = vadd.f32 %v387, %v389
        %398 = vrot.lane.b32.xlu0 %v392, 127
        %v399 = vpop.permute.xlu0 %398
        %400 = vrot.lane.b32.xlu0 %v393, 127
        %v401 = vpop.permute.xlu0 %400
        %v404 = vadd.f32 %v390, %v399
        %v405 = vadd.f32 %v391, %v401
        %408 = vrot.lane.b32.xlu0 %v394, 126
        %v409 = vpop.permute.xlu0 %408
        %410 = vrot.lane.b32.xlu0 %v395, 126
        %v411 = vpop.permute.xlu0 %410
        %v414 = vadd.f32 %v404, %v409
        %v415 = vadd.f32 %v405, %v411
        %417 = vset.pattern.permute.xlu0 0
        %418 = vperm.xlu0 %417, %v236
        %v419 = vpop.permute.xlu0 %418
        %422 = vset.pattern.permute.xlu0 0
        %423 = vperm.xlu0 %422, %v237
        %v424 = vpop.permute.xlu0 %423
        %v426 = vadd.f32 %v414, %v419
        %v427 = vadd.f32 %v415, %v424
        %v428 = vmax.f32 %v426, 0.0
        %v429 = vlaneseq
        %v430 = vand.u32 %v429, 127
        %vm431 = vcmp.ge.s32.totalorder %v430, 1
        %vm432 = vcmp.lt.s32.totalorder %v430, 17
        %vm433 = vmand %vm431, %vm432
        %v434 = vsel %vm433, %v428, 0.0
        %436 = vset.pattern.permute.xlu0 0
        %437 = vperm.xlu0 %436, %v238
        %v438 = vpop.permute.xlu0 %437
        %v440 = vlaneseq
        %v441 = vshrl.u32 %v440, 7
        %v442 = vsub.s32 0, %v441
        %v443 = vrot.slane %v434, %v442
        %v444 = vmul.f32 %v438, %v443
        %445 = vset.pattern.permute.xlu0 1
        %446 = vperm.xlu0 %445, %v238
        %v447 = vpop.permute.xlu0 %446
        %v449 = vlaneseq
        %v450 = vshrl.u32 %v449, 7
        %v451 = vsub.s32 1, %v450
        %v452 = vrot.slane %v434, %v451
        %v453 = vmul.f32 %v447, %v452
        %454 = vset.pattern.permute.xlu0 2
        %455 = vperm.xlu0 %454, %v238
        %v456 = vpop.permute.xlu0 %455
        %v458 = vlaneseq
        %v459 = vshrl.u32 %v458, 7
        %v460 = vsub.s32 2, %v459
        %v461 = vrot.slane %v434, %v460
        %v462 = vmul.f32 %v456, %v461
        %463 = vset.pattern.permute.xlu0 3
        %464 = vperm.xlu0 %463, %v238
        %v465 = vpop.permute.xlu0 %464
        %v467 = vlaneseq
        %v468 = vshrl.u32 %v467, 7
        %v469 = vsub.s32 3, %v468
        %v470 = vrot.slane %v434, %v469
        %v471 = vmul.f32 %v465, %v470
        %472 = vset.pattern.permute.xlu0 4
        %473 = vperm.xlu0 %472, %v238
        %v474 = vpop.permute.xlu0 %473
        %v476 = vlaneseq
        %v477 = vshrl.u32 %v476, 7
        %v478 = vsub.s32 4, %v477
        %v479 = vrot.slane %v434, %v478
        %v480 = vmul.f32 %v474, %v479
        %481 = vset.pattern.permute.xlu0 5
        %482 = vperm.xlu0 %481, %v238
        %v483 = vpop.permute.xlu0 %482
        %v485 = vlaneseq
        %v486 = vshrl.u32 %v485, 7
        %v487 = vsub.s32 5, %v486
        %v488 = vrot.slane %v434, %v487
        %v489 = vmul.f32 %v483, %v488
        %490 = vset.pattern.permute.xlu0 6
        %491 = vperm.xlu0 %490, %v238
        %v492 = vpop.permute.xlu0 %491
        %v494 = vlaneseq
        %v495 = vshrl.u32 %v494, 7
        %v496 = vsub.s32 6, %v495
        %v497 = vrot.slane %v434, %v496
        %v498 = vmul.f32 %v492, %v497
        %499 = vset.pattern.permute.xlu0 7
        %500 = vperm.xlu0 %499, %v238
        %v501 = vpop.permute.xlu0 %500
        %v503 = vlaneseq
        %v504 = vshrl.u32 %v503, 7
        %v505 = vsub.s32 7, %v504
        %v506 = vrot.slane %v434, %v505
        %v507 = vmul.f32 %v501, %v506
        %508 = vset.pattern.permute.xlu0 8
        %509 = vperm.xlu0 %508, %v238
        %v510 = vpop.permute.xlu0 %509
        %v512 = vmul.f32 %v510, %v443
        %513 = vset.pattern.permute.xlu0 9
        %514 = vperm.xlu0 %513, %v238
        %v515 = vpop.permute.xlu0 %514
        %v517 = vmul.f32 %v515, %v452
        %518 = vset.pattern.permute.xlu0 10
        %519 = vperm.xlu0 %518, %v238
        %v520 = vpop.permute.xlu0 %519
        %v522 = vmul.f32 %v520, %v461
        %523 = vset.pattern.permute.xlu0 11
        %524 = vperm.xlu0 %523, %v238
        %v525 = vpop.permute.xlu0 %524
        %v527 = vmul.f32 %v525, %v470
        %528 = vset.pattern.permute.xlu0 12
        %529 = vperm.xlu0 %528, %v238
        %v530 = vpop.permute.xlu0 %529
        %v532 = vmul.f32 %v530, %v479
        %533 = vset.pattern.permute.xlu0 13
        %534 = vperm.xlu0 %533, %v238
        %v535 = vpop.permute.xlu0 %534
        %v537 = vmul.f32 %v535, %v488
        %538 = vset.pattern.permute.xlu0 14
        %539 = vperm.xlu0 %538, %v238
        %v540 = vpop.permute.xlu0 %539
        %v542 = vmul.f32 %v540, %v497
        %543 = vset.pattern.permute.xlu0 15
        %544 = vperm.xlu0 %543, %v238
        %v545 = vpop.permute.xlu0 %544
        %v547 = vmul.f32 %v545, %v506
        %548 = vset.pattern.permute.xlu0 16
        %549 = vperm.xlu0 %548, %v238
        %v550 = vpop.permute.xlu0 %549
        %v552 = vmul.f32 %v550, %v443
        %553 = vset.pattern.permute.xlu0 17
        %554 = vperm.xlu0 %553, %v238
        %v555 = vpop.permute.xlu0 %554
        %v557 = vmul.f32 %v555, %v452
        %558 = vset.pattern.permute.xlu0 18
        %559 = vperm.xlu0 %558, %v238
        %v560 = vpop.permute.xlu0 %559
        %v562 = vmul.f32 %v560, %v461
        %563 = vset.pattern.permute.xlu0 19
        %564 = vperm.xlu0 %563, %v238
        %v565 = vpop.permute.xlu0 %564
        %v567 = vmul.f32 %v565, %v470
        %568 = vset.pattern.permute.xlu0 20
        %569 = vperm.xlu0 %568, %v238
        %v570 = vpop.permute.xlu0 %569
        %v572 = vmul.f32 %v570, %v479
        %573 = vset.pattern.permute.xlu0 21
        %574 = vperm.xlu0 %573, %v238
        %v575 = vpop.permute.xlu0 %574
        %v577 = vmul.f32 %v575, %v488
        %578 = vset.pattern.permute.xlu0 22
        %579 = vperm.xlu0 %578, %v238
        %v580 = vpop.permute.xlu0 %579
        %v582 = vmul.f32 %v580, %v497
        %583 = vset.pattern.permute.xlu0 23
        %584 = vperm.xlu0 %583, %v238
        %v585 = vpop.permute.xlu0 %584
        %v587 = vmul.f32 %v585, %v506
        %v588 = vadd.f32 %v444, %v453
        %v589 = vadd.f32 %v462, %v471
        %v590 = vadd.f32 %v480, %v489
        %v591 = vadd.f32 %v498, %v507
        %v592 = vadd.f32 %v512, %v517
        %v593 = vadd.f32 %v522, %v527
        %v594 = vadd.f32 %v532, %v537
        %v595 = vadd.f32 %v542, %v547
        %v596 = vadd.f32 %v552, %v557
        %v597 = vadd.f32 %v562, %v567
        %v598 = vadd.f32 %v572, %v577
        %v599 = vadd.f32 %v582, %v587
        %v600 = vadd.f32 %v588, %v589
        %v601 = vadd.f32 %v590, %v591
        %v602 = vadd.f32 %v592, %v593
        %v603 = vadd.f32 %v594, %v595
        %v604 = vadd.f32 %v596, %v597
        %v605 = vadd.f32 %v598, %v599
        %v606 = vadd.f32 %v600, %v601
        %v607 = vadd.f32 %v602, %v603
        %v608 = vadd.f32 %v604, %v605
        %610 = vrot.lane.b32.xlu0 %v607, 127
        %v611 = vpop.permute.xlu0 %610
        %v613 = vadd.f32 %v606, %v611
        %615 = vrot.lane.b32.xlu0 %v608, 126
        %v616 = vpop.permute.xlu0 %615
        %v618 = vadd.f32 %v613, %v616
        %620 = vset.pattern.permute.xlu0 0
        %621 = vperm.xlu0 %620, %v239
        %v622 = vpop.permute.xlu0 %621
        %v624 = vadd.f32 %v618, %v622
        %626 = vrot.lane.b32.xlu0 %v427, 127
        %v627 = vpop.permute.xlu0 %626
        %v629 = vadd.f32 %v624, %v627
        %v630 = vmax.f32 %v629, 0.0
        %vm631 = vcmask 130048
        %632 = vst.msk [vmem:[%s228] sm:$0xff] %vm631, %v630
        %s633 = sand.u32 %s138, 1
        %s634 = scalar_lea.sflag [#allocation4], %s633
        %s635 = sand.u32 %s138, 1
        %s636 = smul.addr %s635, 8
        %s637 = scalar_lea.vmem [#allocation5], %s636
        // Predicated region
        $region45: #{tpu_custom_call.1} parent=39 // pred_check
          %p638 = pneg %p148
        $region46: #{tpu_custom_call.1} parent=39 // pred_check_branch
          %640 = sbr.rel (%p638) target = $region48
        $region47: #{tpu_custom_call.1} parent=39 // pred_region
          %s642 = ssub.s32 128, 128
          %643 = vsyncadd %s634, %s642
          %s644 = smul.addr %s20, 128
          %s645 = scalar_lea.hbm %s5, %s644
          %s647 = sshll.u32 %s637, 4
          %s648 = int_to_ptr.vmem [resolvable:$true] %s647
          %650 = dma.vmem_to_hbm [thread:$0]  %s648, 128, %s645, %s634
        $region48: #{tpu_custom_call.1} parent=39 // pred_fallthru
          _
      $region40: #{tpu_custom_call.1} parent=5 // pred_fallthru
        _
      %p651 = scmp.le.s32.totalorder 2, %s15
      // Predicated region
      $region49: #{tpu_custom_call.1} parent=5 // pred_check
        %p652 = pneg %p651
      $region50: #{tpu_custom_call.1} parent=5 // pred_check_branch
        %654 = sbr.rel (%p652) target = $region52
      $region51: #{tpu_custom_call.1} parent=5 // pred_region
        %s655 = ssub.s32 %s15, 2
        // Predicated region
        $region53: #{tpu_custom_call.1} parent=51 // pred_check
          %p656 = pneg %p154
        $region54: #{tpu_custom_call.1} parent=51 // pred_check_branch
          %658 = sbr.rel (%p656) target = $region56
        $region55: #{tpu_custom_call.1} parent=51 // pred_region
          %s659 = sand.u32 %s139, 1
          %s660 = scalar_lea.sflag [#allocation4], %s659
          %s661 = sand.u32 %s139, 1
          %s662 = smul.addr %s661, 8
          %s663 = scalar_lea.vmem [#allocation5], %s662
          %664 = dma.done %s660, 128
        $region56: #{tpu_custom_call.1} parent=51 // pred_fallthru
          _
      $region52: #{tpu_custom_call.1} parent=5 // pred_fallthru
        _
    $region6: #{tpu_custom_call.1} parent=1 // loop_footer
      %s19 = sadd.s32 1, %s15
    $region7: #{tpu_custom_call.1} parent=1 // loop_footer_branch
      %14 = sbr.rel target = $region3
    $region8: #{tpu_custom_call.1} parent=1 // loop_exit
      _
    %665 = vsyncpa [#allocation3], 1
    %s666 = scalar_lea.sflag [#allocation3], 1
    %667 = vsyncpa %s666, 1
    %668 = vsyncpa [#allocation4], 1
    %s669 = scalar_lea.sflag [#allocation4], 1
    %670 = vsyncpa %s669, 1

</llo_original>
